<compile_context>
chip_gen: v5e
topology: v5e:2x2
jax: 0.10.0
libtpu: 0.0.40
codegen_flags: <defaults>
</compile_context>

<pallas_src>
import functools

import jax
import jax.numpy as jnp
from jax.experimental import pallas as pl
from jax.experimental.pallas import tpu as pltpu

STATE_DIM = 4        # CartPole-v1 observation_space.shape[0]
ACTION_DIM = 2       # CartPole-v1 action_space.n
HIDDEN = 128
_STATE_PAD = 8       # pad K=4 -> 8 (sublane multiple / full-dim block)
_OUT_LANES = 8       # narrow padded head: 8 cols instead of 128 (HBM-write bound)
_MAX_TB = 4096       # batch tile size for large batches (amortizes ~0.35us/step)


def _dqn_kernel(x_ref, w1_ref, b1_ref, w2_ref, b2_ref, w3_ref, b3_ref, o_ref):
    # ---- layer 1: (TB,8) x (8,128) f32 MXU matmul (zero-padded K).  The MXU
    # has slack in this memory-bound kernel; avoids the lane-broadcast / XLU
    # work of a per-column VPU FMA loop.  Padded rows/cols contribute exactly 0.
    h1 = jnp.dot(x_ref[...], w1_ref[...],
                 preferred_element_type=jnp.float32) + b1_ref[...]
    h1 = jnp.tanh(h1)                              # f32 tanh (works on v5e too)

    # ---- layer 2: bf16 MXU operands, f32 accumulation / bias / tanh.
    h2 = jnp.dot(h1.astype(jnp.bfloat16), w2_ref[...],
                 preferred_element_type=jnp.float32) + b2_ref[...]
    h2 = jnp.tanh(h2)

    # ---- layer 3: head padded only to 8 lanes -> 16x less output HBM traffic.
    out = jnp.dot(h2.astype(jnp.bfloat16), w3_ref[...],
                  preferred_element_type=jnp.float32) + b3_ref[...]
    o_ref[...] = out.astype(o_ref.dtype)


def prepare_params(params):
    """One-time preprocessing (pads / casts / reshapes) hoisted out of the hot path."""
    w1 = (jnp.zeros((_STATE_PAD, HIDDEN), jnp.float32)
          .at[:STATE_DIM, :].set(params["w1"].astype(jnp.float32)))
    b1 = params["b1"].reshape(1, HIDDEN).astype(jnp.float32)
    w2 = params["w2"].astype(jnp.bfloat16)                      # bf16 MXU operand
    b2 = params["b2"].reshape(1, HIDDEN).astype(jnp.float32)
    w3 = (jnp.zeros((HIDDEN, _OUT_LANES), jnp.float32)
          .at[:, :ACTION_DIM].set(params["w3"].astype(jnp.float32))
          ).astype(jnp.bfloat16)
    b3 = (jnp.zeros((1, _OUT_LANES), jnp.float32)
          .at[:, :ACTION_DIM].set(params["b3"].reshape(1, -1).astype(jnp.float32)))
    return dict(w1=w1, b1=b1, w2=w2, b2=b2, w3=w3, b3=b3)


@functools.partial(jax.jit)
def dqn_forward(x, prep):
    """x: (B, STATE_DIM) float32; prep: output of prepare_params()."""
    B = x.shape[0]

    # Pad batch to a multiple of 8 (f32 sublane).  If the whole batch fits in
    # one tile, split it into >=2 grid steps so v7x megacore can shard.
    b_pad = -(-B // 8) * 8
    if b_pad <= _MAX_TB:
        tb = max(8, -(-(b_pad // 2) // 8) * 8) if b_pad > 8 else 8
    else:
        tb = _MAX_TB
    b_pad = -(-b_pad // tb) * tb

    # Pad features 4 -> 8 (and batch rows) in one op; fuses under jit.
    x = jnp.pad(x, ((0, b_pad - B), (0, _STATE_PAD - STATE_DIM)))

    w1, b1, w2, b2, w3, b3 = (prep["w1"], prep["b1"], prep["w2"],
                              prep["b2"], prep["w3"], prep["b3"])

    resident = lambda a: pl.BlockSpec(a.shape, lambda i: (0, 0))  # VMEM-resident

    flops = 2 * b_pad * (_STATE_PAD * HIDDEN + HIDDEN * HIDDEN
                         + HIDDEN * _OUT_LANES)
    transcendentals = 2 * b_pad * HIDDEN
    bytes_accessed = (x.size * 4
                      + w1.size * 4 + b1.size * 4
                      + w2.size * 2 + b2.size * 4
                      + w3.size * 2 + b3.size * 4
                      + b_pad * _OUT_LANES * 4)

    out = pl.pallas_call(
        _dqn_kernel,
        out_shape=jax.ShapeDtypeStruct((b_pad, _OUT_LANES), jnp.float32),
        grid=(b_pad // tb,),
        in_specs=[
            pl.BlockSpec((tb, _STATE_PAD), lambda i: (i, 0)),    # x: tiled over batch
            resident(w1), resident(b1),
            resident(w2), resident(b2),
            resident(w3), resident(b3),
        ],
        out_specs=pl.BlockSpec((tb, _OUT_LANES), lambda i: (i, 0)),
        compiler_params=pltpu.CompilerParams(
            dimension_semantics=("parallel",)),                  # megacore on v7x
        cost_estimate=pl.CostEstimate(
            flops=flops, transcendentals=transcendentals,
            bytes_accessed=bytes_accessed),
    )(x, w1, b1, w2, b2, w3, b3)

    return out[:B, :ACTION_DIM]


def init_params(key):
    """Deterministic init mirroring PyTorch nn.Linear default U(-1/sqrt(fan_in), +)."""
    def linear(key, fan_in, fan_out):
        kw, kb = jax.random.split(key)
        bound = 1.0 / jnp.sqrt(jnp.float32(fan_in))
        w = jax.random.uniform(kw, (fan_in, fan_out), jnp.float32, -bound, bound)
        b = jax.random.uniform(kb, (fan_out,), jnp.float32, -bound, bound)
        return w, b

    k1, k2, k3 = jax.random.split(key, 3)
    w1, b1 = linear(k1, STATE_DIM, HIDDEN)
    w2, b2 = linear(k2, HIDDEN, HIDDEN)
    w3, b3 = linear(k3, HIDDEN, ACTION_DIM)
    return dict(w1=w1, b1=b1, w2=w2, b2=b2, w3=w3, b3=b3)


def dqn_reference_f32(x, p):
    h1 = jnp.tanh(x @ p["w1"] + p["b1"])
    h2 = jnp.tanh(h1 @ p["w2"] + p["b2"])
    return h2 @ p["w3"] + p["b3"]


def dqn_reference_mixed(x, p):
    """Reference with the same bf16-operand / f32-accumulate precision for layers 2/3."""
    h1 = jnp.tanh(x @ p["w1"] + p["b1"])
    h2 = jnp.tanh(jnp.dot(h1.astype(jnp.bfloat16), p["w2"].astype(jnp.bfloat16),
                          preferred_element_type=jnp.float32) + p["b2"])
    return jnp.dot(h2.astype(jnp.bfloat16), p["w3"].astype(jnp.bfloat16),
                   preferred_element_type=jnp.float32) + p["b3"]


if __name__ == "__main__":
    key = jax.random.PRNGKey(0)
    kp, kx = jax.random.split(key)
    params = init_params(kp)
    prep = prepare_params(params)   # one-time; reused across forward calls

    batch = 8
    x = jax.random.normal(kx, (batch, STATE_DIM), jnp.float32)

    out = jax.block_until_ready(dqn_forward(x, prep))
    assert out.shape == (batch, ACTION_DIM), out.shape
    assert jnp.allclose(out, dqn_reference_mixed(x, params), atol=2e-3, rtol=2e-3)
    assert jnp.allclose(out, dqn_reference_f32(x, params), atol=5e-2, rtol=5e-2)

    # Non-multiple-of-8 batch exercises the padding path.
    x5 = jax.random.normal(jax.random.PRNGKey(1), (5, STATE_DIM), jnp.float32)
    out5 = jax.block_until_ready(dqn_forward(x5, prep))
    assert out5.shape == (5, ACTION_DIM), out5.shape
    assert jnp.allclose(out5, dqn_reference_mixed(x5, params), atol=2e-3, rtol=2e-3)

    # Mid-size batch exercises the multi-step (grid >= 2) path.
    x200 = jax.random.normal(jax.random.PRNGKey(2), (200, STATE_DIM), jnp.float32)
    out200 = jax.block_until_ready(dqn_forward(x200, prep))
    assert out200.shape == (200, ACTION_DIM), out200.shape
    assert jnp.allclose(out200, dqn_reference_mixed(x200, params), atol=2e-3, rtol=2e-3)

    print("KERNEL_OK")
</pallas_src>

<mosaic_0001>
module attributes {stable_mosaic.version = 11 : i64} {
  func.func @_dqn_kernel(%arg0: i32, %arg1: memref<8x8xf32, #tpu.memory_space<vmem>>, %arg2: memref<8x128xf32, #tpu.memory_space<vmem>>, %arg3: memref<1x128xf32, #tpu.memory_space<vmem>>, %arg4: memref<128x128xbf16, #tpu.memory_space<vmem>>, %arg5: memref<1x128xf32, #tpu.memory_space<vmem>>, %arg6: memref<128x8xbf16, #tpu.memory_space<vmem>>, %arg7: memref<1x8xf32, #tpu.memory_space<vmem>>, %arg8: memref<8x8xf32, #tpu.memory_space<vmem>>) attributes {dimension_semantics = [#tpu.dimension_semantics<parallel>], iteration_bounds = array<i64: 1>, scalar_prefetch = 0 : i64, scratch_operands = 0 : i64, tpu.core_type = #tpu.core_type<tc>, window_params = [{transform_indices = @transform_0, window_bounds = array<i64: 8, 8>}, {pipeline_mode = #tpu.pipeline_mode<synchronous>, transform_indices = @transform_1, window_bounds = array<i64: 8, 128>}, {pipeline_mode = #tpu.pipeline_mode<synchronous>, transform_indices = @transform_2, window_bounds = array<i64: 1, 128>}, {pipeline_mode = #tpu.pipeline_mode<synchronous>, transform_indices = @transform_3, window_bounds = array<i64: 128, 128>}, {pipeline_mode = #tpu.pipeline_mode<synchronous>, transform_indices = @transform_4, window_bounds = array<i64: 1, 128>}, {pipeline_mode = #tpu.pipeline_mode<synchronous>, transform_indices = @transform_5, window_bounds = array<i64: 128, 8>}, {pipeline_mode = #tpu.pipeline_mode<synchronous>, transform_indices = @transform_6, window_bounds = array<i64: 1, 8>}, {transform_indices = @transform_7, window_bounds = array<i64: 8, 8>}]} {
    %c0 = arith.constant 0 : index
    %c0_0 = arith.constant 0 : index
    %0 = vector.load %arg1[%c0, %c0_0] : memref<8x8xf32, #tpu.memory_space<vmem>>, vector<8x8xf32>
    %c0_1 = arith.constant 0 : index
    %c0_2 = arith.constant 0 : index
    %1 = vector.load %arg2[%c0_1, %c0_2] : memref<8x128xf32, #tpu.memory_space<vmem>>, vector<8x128xf32>
    %cst = arith.constant dense<0.000000e+00> : vector<8x128xf32>
    %2 = tpu.matmul %0, %1, %cst {dimension_numbers = #tpu.dot_dimension_numbers<[1], [0], [0], [1], [0, 0, 1, 1], [], []>} : vector<8x8xf32>, vector<8x128xf32>, vector<8x128xf32> -> vector<8x128xf32>
    %c0_3 = arith.constant 0 : index
    %c0_4 = arith.constant 0 : index
    %3 = vector.load %arg3[%c0_3, %c0_4] : memref<1x128xf32, #tpu.memory_space<vmem>>, vector<1x128xf32>
    %4 = vector.broadcast %3 : vector<1x128xf32> to vector<8x128xf32>
    %5 = arith.addf %2, %4 : vector<8x128xf32>
    %6 = math.tanh %5 : vector<8x128xf32>
    %7 = arith.truncf %6 : vector<8x128xf32> to vector<8x128xbf16>
    %c0_5 = arith.constant 0 : index
    %c0_6 = arith.constant 0 : index
    %8 = vector.load %arg4[%c0_5, %c0_6] : memref<128x128xbf16, #tpu.memory_space<vmem>>, vector<128x128xbf16>
    %cst_7 = arith.constant dense<0.000000e+00> : vector<8x128xf32>
    %9 = tpu.matmul %7, %8, %cst_7 {dimension_numbers = #tpu.dot_dimension_numbers<[1], [0], [0], [1], [0, 0, 1, 1], [], []>} : vector<8x128xbf16>, vector<128x128xbf16>, vector<8x128xf32> -> vector<8x128xf32>
    %c0_8 = arith.constant 0 : index
    %c0_9 = arith.constant 0 : index
    %10 = vector.load %arg5[%c0_8, %c0_9] : memref<1x128xf32, #tpu.memory_space<vmem>>, vector<1x128xf32>
    %11 = vector.broadcast %10 : vector<1x128xf32> to vector<8x128xf32>
    %12 = arith.addf %9, %11 : vector<8x128xf32>
    %13 = math.tanh %12 : vector<8x128xf32>
    %14 = arith.truncf %13 : vector<8x128xf32> to vector<8x128xbf16>
    %c0_10 = arith.constant 0 : index
    %c0_11 = arith.constant 0 : index
    %15 = vector.load %arg6[%c0_10, %c0_11] : memref<128x8xbf16, #tpu.memory_space<vmem>>, vector<128x8xbf16>
    %cst_12 = arith.constant dense<0.000000e+00> : vector<8x8xf32>
    %16 = tpu.matmul %14, %15, %cst_12 {dimension_numbers = #tpu.dot_dimension_numbers<[1], [0], [0], [1], [0, 0, 1, 1], [], []>} : vector<8x128xbf16>, vector<128x8xbf16>, vector<8x8xf32> -> vector<8x8xf32>
    %c0_13 = arith.constant 0 : index
    %c0_14 = arith.constant 0 : index
    %17 = vector.load %arg7[%c0_13, %c0_14] : memref<1x8xf32, #tpu.memory_space<vmem>>, vector<1x8xf32>
    %18 = vector.broadcast %17 : vector<1x8xf32> to vector<8x8xf32>
    %19 = arith.addf %16, %18 : vector<8x8xf32>
    %c0_15 = arith.constant 0 : index
    %c0_16 = arith.constant 0 : index
    %20 = vector.load %arg8[%c0_15, %c0_16] : memref<8x8xf32, #tpu.memory_space<vmem>>, vector<8x8xf32>
    tpu.vector_store %arg8[%c0_15, %c0_16], %19 {strides = array<i32>} : memref<8x8xf32, #tpu.memory_space<vmem>>, vector<8x8xf32>,
    return
  }
  func.func @transform_0(%arg0: i32) -> (i32, i32) {
    %c0_i32 = arith.constant 0 : i32
    %c0_i32_0 = arith.constant 0 : i32
    return %arg0, %c0_i32 : i32, i32
  }
  func.func @transform_1(%arg0: i32) -> (i32, i32) {
    %c0_i32 = arith.constant 0 : i32
    %c0_i32_0 = arith.constant 0 : i32
    %c0_i32_1 = arith.constant 0 : i32
    return %c0_i32, %c0_i32_0 : i32, i32
  }
  func.func @transform_2(%arg0: i32) -> (i32, i32) {
    %c0_i32 = arith.constant 0 : i32
    %c0_i32_0 = arith.constant 0 : i32
    %c0_i32_1 = arith.constant 0 : i32
    return %c0_i32, %c0_i32_0 : i32, i32
  }
  func.func @transform_3(%arg0: i32) -> (i32, i32) {
    %c0_i32 = arith.constant 0 : i32
    %c0_i32_0 = arith.constant 0 : i32
    %c0_i32_1 = arith.constant 0 : i32
    return %c0_i32, %c0_i32_0 : i32, i32
  }
  func.func @transform_4(%arg0: i32) -> (i32, i32) {
    %c0_i32 = arith.constant 0 : i32
    %c0_i32_0 = arith.constant 0 : i32
    %c0_i32_1 = arith.constant 0 : i32
    return %c0_i32, %c0_i32_0 : i32, i32
  }
  func.func @transform_5(%arg0: i32) -> (i32, i32) {
    %c0_i32 = arith.constant 0 : i32
    %c0_i32_0 = arith.constant 0 : i32
    %c0_i32_1 = arith.constant 0 : i32
    return %c0_i32, %c0_i32_0 : i32, i32
  }
  func.func @transform_6(%arg0: i32) -> (i32, i32) {
    %c0_i32 = arith.constant 0 : i32
    %c0_i32_0 = arith.constant 0 : i32
    %c0_i32_1 = arith.constant 0 : i32
    return %c0_i32, %c0_i32_0 : i32, i32
  }
  func.func @transform_7(%arg0: i32) -> (i32, i32) {
    %c0_i32 = arith.constant 0 : i32
    %c0_i32_0 = arith.constant 0 : i32
    return %arg0, %c0_i32 : i32, i32
  }
}

</mosaic_0001>

<llo_original>
// kernel: dqn_forward.1
$region0: #{dqn_forward.1}
  #allocation0 [shape = 'u32[]', space=smem, size = 0x4, offset = 0x4, fixed_abs, tag = 'smem constant byte address 0x4 - core index']
  #allocation1 [shape = 'u32[72,128]{1,0:T(1,128)}', space=vmem, size = 0x9000, scoped, tag = 'internal scratch']
  %s0 = inlined_call_operand.vmem [shape: f32[8,8], index: 0, kind: input, shape index: {}]
  %s1 = inlined_call_operand.vmem [shape: f32[8,128], index: 1, kind: input, shape index: {}]
  %s2 = inlined_call_operand.vmem [shape: f32[1,128], index: 2, kind: input, shape index: {}]
  %s3 = inlined_call_operand.vmem [shape: bf16[128,128], index: 3, kind: input, shape index: {}]
  %s4 = inlined_call_operand.vmem [shape: f32[1,128], index: 4, kind: input, shape index: {}]
  %s5 = inlined_call_operand.vmem [shape: bf16[128,8], index: 5, kind: input, shape index: {}]
  %s6 = inlined_call_operand.vmem [shape: f32[1,8], index: 6, kind: input, shape index: {}]
  %s7 = inlined_call_operand.vmem [shape: f32[8,8], index: 7, kind: output, shape index: {}]
  %s8 = sld [smem:[#allocation0]]
  $region38: #{dqn_forward.1} parent=0
    _
  %s10 = ssub.s32 1, %s8
  %s11 = scalar_select 0, %s10, %s8
  // Predicated region
  $region2: #{dqn_forward.1} parent=0 // pred_check
    _
  $region3: #{dqn_forward.1} parent=0 // pred_check_branch
    %13 = sbr.rel (0) target = $region5
  $region4: #{dqn_forward.1} parent=0 // pred_region
    _
  $region5: #{dqn_forward.1} parent=0 // pred_fallthru
    _
  // Predicated region
  $region6: #{dqn_forward.1} parent=0 // pred_check
    _
  $region7: #{dqn_forward.1} parent=0 // pred_check_branch
    %15 = sbr.rel (0) target = $region9
  $region8: #{dqn_forward.1} parent=0 // pred_region
    _
  $region9: #{dqn_forward.1} parent=0 // pred_fallthru
    _
  // Predicated region
  $region10: #{dqn_forward.1} parent=0 // pred_check
    _
  $region11: #{dqn_forward.1} parent=0 // pred_check_branch
    %17 = sbr.rel (0) target = $region13
  $region12: #{dqn_forward.1} parent=0 // pred_region
    _
  $region13: #{dqn_forward.1} parent=0 // pred_fallthru
    _
  // Predicated region
  $region14: #{dqn_forward.1} parent=0 // pred_check
    _
  $region15: #{dqn_forward.1} parent=0 // pred_check_branch
    %19 = sbr.rel (0) target = $region17
  $region16: #{dqn_forward.1} parent=0 // pred_region
    _
  $region17: #{dqn_forward.1} parent=0 // pred_fallthru
    _
  // Predicated region
  $region18: #{dqn_forward.1} parent=0 // pred_check
    _
  $region19: #{dqn_forward.1} parent=0 // pred_check_branch
    %21 = sbr.rel (0) target = $region21
  $region20: #{dqn_forward.1} parent=0 // pred_region
    _
  $region21: #{dqn_forward.1} parent=0 // pred_fallthru
    _
  // Predicated region
  $region22: #{dqn_forward.1} parent=0 // pred_check
    _
  $region23: #{dqn_forward.1} parent=0 // pred_check_branch
    %23 = sbr.rel (0) target = $region25
  $region24: #{dqn_forward.1} parent=0 // pred_region
    _
  $region25: #{dqn_forward.1} parent=0 // pred_fallthru
    _
  // Predicated region
  $region26: #{dqn_forward.1} parent=0 // pred_check
    _
  $region27: #{dqn_forward.1} parent=0 // pred_check_branch
    %25 = sbr.rel (0) target = $region29
  $region28: #{dqn_forward.1} parent=0 // pred_region
    _
  $region29: #{dqn_forward.1} parent=0 // pred_fallthru
    _
  %v26 = vld [vmem:[%s0] sm:$0xff]
  %v27 = vld [vmem:[%s1] sm:$0xff]
  %v28 = vld [vmem:[%s2] sm:$0x1]
  %v30 = vperm.slane %v28, 0
  %vm32 = vcmask 64512
  %v34 = vsel %vm32, %v26, 0
  %36 = vmatpush.msra.mxu0 0.0
  %37 = vmatpush.msra.mxu0 0.0
  %38 = vmatpush.msra.mxu0 0.0
  %39 = vmatpush.msra.mxu0 0.0
  %40 = vmatpush.msra.mxu0 0.0
  %41 = vmatpush.msra.mxu0 0.0
  %42 = vmatpush.msra.mxu0 0.0
  %43 = vmatpush.msra.mxu0 0.0
  %44 = vmatpush.msra.mxu0 0.0
  %45 = vmatpush.msra.mxu0 0.0
  %46 = vmatpush.msra.mxu0 0.0
  %47 = vmatpush.msra.mxu0 0.0
  %48 = vmatpush.msra.mxu0 0.0
  %49 = vmatpush.msra.mxu0 0.0
  %50 = vmatpush.msra.mxu0 0.0
  %51 = vmatpush.msra.mxu0 %v27
  %52 = vmatmul.f32.gmra.mxu0 %v34
  %v53 = vpop.f32.mrf.mxu0
  %v54 = vadd.f32 %v30, %v53
  %55 = vdwg.mxu0
  %v56 = vtanh.pop %v54
  %v57 = vpack.c.bf16 %v56, %v56
  %v58 = vld [vmem:[%s3] sm:$0xf]
  %v59 = vld [vmem:[%s3 + $0x4] sm:$0xf]
  %v60 = vld [vmem:[%s3 + $0x8] sm:$0xf]
  %v61 = vld [vmem:[%s3 + $0xc] sm:$0xf]
  %v62 = vld [vmem:[%s3 + $0x10] sm:$0xf]
  %v63 = vld [vmem:[%s3 + $0x14] sm:$0xf]
  %v64 = vld [vmem:[%s3 + $0x18] sm:$0xf]
  %v65 = vld [vmem:[%s3 + $0x1c] sm:$0xf]
  %v66 = vld [vmem:[%s3 + $0x20] sm:$0xf]
  %v67 = vld [vmem:[%s3 + $0x24] sm:$0xf]
  %v68 = vld [vmem:[%s3 + $0x28] sm:$0xf]
  %v69 = vld [vmem:[%s3 + $0x2c] sm:$0xf]
  %v70 = vld [vmem:[%s3 + $0x30] sm:$0xf]
  %v71 = vld [vmem:[%s3 + $0x34] sm:$0xf]
  %v72 = vld [vmem:[%s3 + $0x38] sm:$0xf]
  %v73 = vld [vmem:[%s3 + $0x3c] sm:$0xf]
  %v74 = vld [vmem:[%s4] sm:$0x1]
  %v76 = vperm.slane %v74, 0
  %v94 = vunpack.c.l.b16 %v58
  %v95 = vunpack.c.l.b16 %v59
  %v96 = vunpack.c.l.b16 %v60
  %v97 = vunpack.c.l.b16 %v61
  %v98 = vunpack.c.l.b16 %v62
  %v99 = vunpack.c.l.b16 %v63
  %v100 = vunpack.c.l.b16 %v64
  %v101 = vunpack.c.l.b16 %v65
  %v102 = vunpack.c.l.b16 %v66
  %v103 = vunpack.c.l.b16 %v67
  %v104 = vunpack.c.l.b16 %v68
  %v105 = vunpack.c.l.b16 %v69
  %v106 = vunpack.c.l.b16 %v70
  %v107 = vunpack.c.l.b16 %v71
  %v108 = vunpack.c.l.b16 %v72
  %v109 = vunpack.c.l.b16 %v73
  %v110 = vpack.c.b16 %v95, %v94
  %v111 = vpack.c.b16 %v97, %v96
  %v112 = vpack.c.b16 %v99, %v98
  %v113 = vpack.c.b16 %v101, %v100
  %v114 = vpack.c.b16 %v103, %v102
  %v115 = vpack.c.b16 %v105, %v104
  %v116 = vpack.c.b16 %v107, %v106
  %v117 = vpack.c.b16 %v109, %v108
  %126 = vmatpush.bf16.msra.mxu0 %v117
  %127 = vmatpush.bf16.msra.mxu0 %v116
  %128 = vmatpush.bf16.msra.mxu0 %v115
  %129 = vmatpush.bf16.msra.mxu0 %v114
  %130 = vmatpush.bf16.msra.mxu0 %v113
  %131 = vmatpush.bf16.msra.mxu0 %v112
  %132 = vmatpush.bf16.msra.mxu0 %v111
  %133 = vmatpush.bf16.msra.mxu0 %v110
  %134 = vmatmul.bf16.gmra.mxu0 %v57
  %v135 = vpop.f32.mrf.mxu0
  %v136 = vadd.f32 %v76, %v135
  %v137 = vpop.f32.mrf.mxu0
  %138 = vdwg.mxu0
  %v139 = vtanh.pop %v136
  %v140 = vpack.c.bf16 %v139, %v139
  %v141 = vld [vmem:[%s5] sm:$0xf]
  %v142 = vld [vmem:[%s5 + $0x4] sm:$0xf]
  %v143 = vld [vmem:[%s5 + $0x8] sm:$0xf]
  %v144 = vld [vmem:[%s5 + $0xc] sm:$0xf]
  %v145 = vld [vmem:[%s5 + $0x10] sm:$0xf]
  %v146 = vld [vmem:[%s5 + $0x14] sm:$0xf]
  %v147 = vld [vmem:[%s5 + $0x18] sm:$0xf]
  %v148 = vld [vmem:[%s5 + $0x1c] sm:$0xf]
  %v149 = vld [vmem:[%s5 + $0x20] sm:$0xf]
  %v150 = vld [vmem:[%s5 + $0x24] sm:$0xf]
  %v151 = vld [vmem:[%s5 + $0x28] sm:$0xf]
  %v152 = vld [vmem:[%s5 + $0x2c] sm:$0xf]
  %v153 = vld [vmem:[%s5 + $0x30] sm:$0xf]
  %v154 = vld [vmem:[%s5 + $0x34] sm:$0xf]
  %v155 = vld [vmem:[%s5 + $0x38] sm:$0xf]
  %v156 = vld [vmem:[%s5 + $0x3c] sm:$0xf]
  %v157 = vld [vmem:[%s6] sm:$0x1]
  %v159 = vperm.slane %v157, 0
  %v177 = vunpack.c.l.b16 %v141
  %v178 = vunpack.c.l.b16 %v142
  %v179 = vunpack.c.l.b16 %v143
  %v180 = vunpack.c.l.b16 %v144
  %v181 = vunpack.c.l.b16 %v145
  %v182 = vunpack.c.l.b16 %v146
  %v183 = vunpack.c.l.b16 %v147
  %v184 = vunpack.c.l.b16 %v148
  %v185 = vunpack.c.l.b16 %v149
  %v186 = vunpack.c.l.b16 %v150
  %v187 = vunpack.c.l.b16 %v151
  %v188 = vunpack.c.l.b16 %v152
  %v189 = vunpack.c.l.b16 %v153
  %v190 = vunpack.c.l.b16 %v154
  %v191 = vunpack.c.l.b16 %v155
  %v192 = vunpack.c.l.b16 %v156
  %v193 = vpack.c.b16 %v178, %v177
  %v194 = vpack.c.b16 %v180, %v179
  %v195 = vpack.c.b16 %v182, %v181
  %v196 = vpack.c.b16 %v184, %v183
  %v197 = vpack.c.b16 %v186, %v185
  %v198 = vpack.c.b16 %v188, %v187
  %v199 = vpack.c.b16 %v190, %v189
  %v200 = vpack.c.b16 %v192, %v191
  %209 = vmatpush.bf16.msra.mxu0 %v200
  %210 = vmatpush.bf16.msra.mxu0 %v199
  %211 = vmatpush.bf16.msra.mxu0 %v198
  %212 = vmatpush.bf16.msra.mxu0 %v197
  %213 = vmatpush.bf16.msra.mxu0 %v196
  %214 = vmatpush.bf16.msra.mxu0 %v195
  %215 = vmatpush.bf16.msra.mxu0 %v194
  %216 = vmatpush.bf16.msra.mxu0 %v193
  %217 = vmatmul.bf16.gmra.mxu0 %v140
  %v218 = vpop.f32.mrf.mxu0
  %v219 = vadd.f32 %v159, %v218
  %v220 = vpop.f32.mrf.mxu0
  %221 = vdwg.mxu0
  %222 = vst.msk [vmem:[%s7] sm:$0xff] %vm32, %v219
  // Predicated region
  $region30: #{dqn_forward.1} parent=0 // pred_check
    _
  $region31: #{dqn_forward.1} parent=0 // pred_check_branch
    %224 = sbr.rel (0) target = $region33
  $region32: #{dqn_forward.1} parent=0 // pred_region
    _
  $region33: #{dqn_forward.1} parent=0 // pred_fallthru
    _
  // Predicated region
  $region34: #{dqn_forward.1} parent=0 // pred_check
    _
  $region35: #{dqn_forward.1} parent=0 // pred_check_branch
    %226 = sbr.rel (0) target = $region37
  $region36: #{dqn_forward.1} parent=0 // pred_region
    _
  $region37: #{dqn_forward.1} parent=0 // pred_fallthru
    _

</llo_original>
